<compile_context>
chip_gen: v7x
topology: tpu7x:2x2x1
jax: 0.10.0
libtpu: 0.0.40
codegen_flags: <defaults>
</compile_context>

<pallas_src>
import jax
import jax.numpy as jnp
from jax.experimental import pallas as pl
from jax.experimental.pallas import tpu as pltpu


def _external_attention_kernel(q_ref, wkT_ref, wvT_ref, o_ref):
    # q_ref:   (Bb, N, Dp)   queries block (Dp = lane-padded d_model)
    # wkT_ref: (Dp, S)       Wk^T (pre-transposed in wrapper)
    # wvT_ref: (S, Dp)       Wv^T (pre-transposed in wrapper)
    # o_ref:   (Bb, N, Dp)
    Bb, N, Dp = q_ref.shape
    S = wkT_ref.shape[1]

    # ---- logits = q @ Wk^T  (MXU, f32 accumulate) -------------------------
    q2 = q_ref[...].reshape(Bb * N, Dp)
    logits = jnp.dot(q2, wkT_ref[...], preferred_element_type=jnp.float32)
    logits = logits.reshape(Bb, N, S)

    # ---- softmax over the N axis (dim=1), per batch slice / per S column --
    m = jnp.max(logits, axis=1, keepdims=True)             # (Bb, 1, S)  XLU
    e = jnp.exp(logits - m)                                 # (Bb, N, S)  EUP
    col = jnp.sum(e, axis=1, keepdims=True)                 # (Bb, 1, S)  XLU
    p = e * (1.0 / col)                                     # column-normalized

    # ---- S-normalization folded into a post-matmul (Bb, N, 1) scale -------
    row = jnp.sum(p, axis=2, keepdims=True)                 # (Bb, N, 1)

    p2 = p.reshape(Bb * N, S).astype(wvT_ref.dtype)
    out = jnp.dot(p2, wvT_ref[...], preferred_element_type=jnp.float32)
    out = out.reshape(Bb, N, Dp) * (1.0 / row)              # scale once, (N,Dp)

    o_ref[...] = out.astype(o_ref.dtype)


def external_attention(queries, wk, wv, *, batch_block=None):
    """queries: (B, N, D); wk: (S, D); wv: (D, S). Returns (B, N, D)."""
    B, N, D = queries.shape
    S = wk.shape[0]
    assert wk.shape == (S, D) and wv.shape == (D, S)

    # Pre-transpose weights outside the kernel (no XLU transpose per step).
    wkT = wk.T  # (D, S)
    wvT = wv.T  # (S, D)

    # Lane-dense padding of the feature dim (exact: zero rows/cols).
    LANE = 128
    Dp = ((D + LANE - 1) // LANE) * LANE
    if Dp != D:
        pad = Dp - D
        q_in = jnp.pad(queries, ((0, 0), (0, 0), (0, pad)))
        wkT = jnp.pad(wkT, ((0, pad), (0, 0)))
        wvT = jnp.pad(wvT, ((0, 0), (0, pad)))
    else:
        q_in = queries

    # Batch elements per grid step: largest divisor of B keeping <= 2048 rows
    # (q + out blocks at Dp lanes stay well inside default VMEM, and the
    # Bb*N-row matmuls fill MXU sublanes).
    if batch_block is None:
        batch_block = 1
        for cand in range(B, 0, -1):
            if B % cand == 0 and cand * N <= 2048:
                batch_block = cand
                break
    if B % batch_block != 0:
        batch_block = 1
    Bb = batch_block
    grid = (B // Bb,)

    out = pl.pallas_call(
        _external_attention_kernel,
        out_shape=jax.ShapeDtypeStruct((B, N, Dp), queries.dtype),
        grid_spec=pltpu.PrefetchScalarGridSpec(
            num_scalar_prefetch=0,
            grid=grid,
            in_specs=[
                pl.BlockSpec((Bb, N, Dp), lambda b: (b, 0, 0)),
                pl.BlockSpec((Dp, S), lambda b: (0, 0)),
                pl.BlockSpec((S, Dp), lambda b: (0, 0)),
            ],
            out_specs=pl.BlockSpec((Bb, N, Dp), lambda b: (b, 0, 0)),
        ),
        compiler_params=pltpu.CompilerParams(
            dimension_semantics=("parallel",),
        ),
    )(q_in, wkT, wvT)

    return out[..., :D] if Dp != D else out


def _reference(queries, wk, wv):
    attn = jnp.einsum("bnd,sd->bns", queries, wk)
    attn = jax.nn.softmax(attn, axis=1)
    attn = attn / jnp.sum(attn, axis=2, keepdims=True)
    return jnp.einsum("bns,ds->bnd", attn, wv)


if __name__ == "__main__":
    B, N, d_model, S = 2, 8, 32, 64

    key = jax.random.PRNGKey(0)
    kq, kk, kv = jax.random.split(key, 3)

    queries = jax.random.normal(kq, (B, N, d_model), dtype=jnp.float32)
    # nn.Linear weights initialized with init.normal_(std=0.001), no bias.
    wk = 0.001 * jax.random.normal(kk, (S, d_model), dtype=jnp.float32)
    wv = 0.001 * jax.random.normal(kv, (d_model, S), dtype=jnp.float32)

    out = external_attention(queries, wk, wv)
    out = jax.block_until_ready(out)

    ref = _reference(queries, wk, wv)
    assert out.shape == (B, N, d_model)
    assert jnp.allclose(out, ref, atol=1e-5, rtol=1e-5)

    print("KERNEL_OK")
</pallas_src>

<mosaic_0001>
module attributes {stable_mosaic.version = 11 : i64} {
  func.func @_external_attention_kernel(%arg0: i32, %arg1: memref<2x8x128xf32, #tpu.memory_space<vmem>>, %arg2: memref<128x64xf32, #tpu.memory_space<vmem>>, %arg3: memref<64x128xf32, #tpu.memory_space<vmem>>, %arg4: memref<2x8x128xf32, #tpu.memory_space<vmem>>) attributes {dimension_semantics = [#tpu.dimension_semantics<parallel>], iteration_bounds = array<i64: 1>, scalar_prefetch = 0 : i64, scratch_operands = 0 : i64, tpu.core_type = #tpu.core_type<tc>, window_params = [{transform_indices = @transform_0, window_bounds = array<i64: 2, 8, 128>}, {pipeline_mode = #tpu.pipeline_mode<synchronous>, transform_indices = @transform_1, window_bounds = array<i64: 128, 64>}, {pipeline_mode = #tpu.pipeline_mode<synchronous>, transform_indices = @transform_2, window_bounds = array<i64: 64, 128>}, {transform_indices = @transform_3, window_bounds = array<i64: 2, 8, 128>}]} {
    %c0 = arith.constant 0 : index
    %c0_0 = arith.constant 0 : index
    %c0_1 = arith.constant 0 : index
    %0 = vector.load %arg1[%c0, %c0_0, %c0_1] : memref<2x8x128xf32, #tpu.memory_space<vmem>>, vector<2x8x128xf32>
    %1 = vector.shape_cast %0 : vector<2x8x128xf32> to vector<16x128xf32>
    %c0_2 = arith.constant 0 : index
    %c0_3 = arith.constant 0 : index
    %2 = vector.load %arg2[%c0_2, %c0_3] : memref<128x64xf32, #tpu.memory_space<vmem>>, vector<128x64xf32>
    %cst = arith.constant dense<0.000000e+00> : vector<16x64xf32>
    %3 = tpu.matmul %1, %2, %cst {dimension_numbers = #tpu.dot_dimension_numbers<[1], [0], [0], [1], [0, 0, 1, 1], [], []>} : vector<16x128xf32>, vector<128x64xf32>, vector<16x64xf32> -> vector<16x64xf32>
    %4 = vector.shape_cast %3 : vector<16x64xf32> to vector<2x8x64xf32>
    %cst_4 = arith.constant dense<0xFF800000> : vector<2x64xf32>
    %5 = vector.multi_reduction <maximumf>, %4, %cst_4 [1] : vector<2x8x64xf32> to vector<2x64xf32>
    %6 = vector.shape_cast %5 : vector<2x64xf32> to vector<2x1x64xf32>
    %7 = vector.broadcast %6 : vector<2x1x64xf32> to vector<2x8x64xf32>
    %8 = arith.subf %4, %7 : vector<2x8x64xf32>
    %9 = math.exp %8 : vector<2x8x64xf32>
    %cst_5 = arith.constant dense<0.000000e+00> : vector<2x64xf32>
    %10 = vector.multi_reduction <add>, %9, %cst_5 [1] : vector<2x8x64xf32> to vector<2x64xf32>
    %11 = vector.shape_cast %10 : vector<2x64xf32> to vector<2x1x64xf32>
    %cst_6 = arith.constant 1.000000e+00 : f32
    %12 = vector.broadcast %cst_6 : f32 to vector<2x1x64xf32>
    %13 = arith.divf %12, %11 : vector<2x1x64xf32>
    %14 = vector.broadcast %13 : vector<2x1x64xf32> to vector<2x8x64xf32>
    %15 = arith.mulf %9, %14 : vector<2x8x64xf32>
    %cst_7 = arith.constant dense<0.000000e+00> : vector<2x8xf32>
    %16 = vector.multi_reduction <add>, %15, %cst_7 [2] : vector<2x8x64xf32> to vector<2x8xf32>
    %17 = vector.shape_cast %16 : vector<2x8xf32> to vector<2x8x1xf32>
    %18 = vector.shape_cast %15 : vector<2x8x64xf32> to vector<16x64xf32>
    %c0_8 = arith.constant 0 : index
    %c0_9 = arith.constant 0 : index
    %19 = vector.load %arg3[%c0_8, %c0_9] : memref<64x128xf32, #tpu.memory_space<vmem>>, vector<64x128xf32>
    %cst_10 = arith.constant dense<0.000000e+00> : vector<16x128xf32>
    %20 = tpu.matmul %18, %19, %cst_10 {dimension_numbers = #tpu.dot_dimension_numbers<[1], [0], [0], [1], [0, 0, 1, 1], [], []>} : vector<16x64xf32>, vector<64x128xf32>, vector<16x128xf32> -> vector<16x128xf32>
    %21 = vector.shape_cast %20 : vector<16x128xf32> to vector<2x8x128xf32>
    %cst_11 = arith.constant 1.000000e+00 : f32
    %22 = vector.broadcast %cst_11 : f32 to vector<2x8x1xf32>
    %23 = arith.divf %22, %17 : vector<2x8x1xf32>
    %24 = vector.broadcast %23 : vector<2x8x1xf32> to vector<2x8x128xf32>
    %25 = arith.mulf %21, %24 : vector<2x8x128xf32>
    %c0_12 = arith.constant 0 : index
    %c0_13 = arith.constant 0 : index
    %c0_14 = arith.constant 0 : index
    %26 = vector.load %arg4[%c0_12, %c0_13, %c0_14] : memref<2x8x128xf32, #tpu.memory_space<vmem>>, vector<2x8x128xf32>
    tpu.vector_store %arg4[%c0_12, %c0_13, %c0_14], %25 {strides = array<i32>} : memref<2x8x128xf32, #tpu.memory_space<vmem>>, vector<2x8x128xf32>,
    return
  }
  func.func @transform_0(%arg0: i32) -> (i32, i32, i32) {
    %c0_i32 = arith.constant 0 : i32
    %c0_i32_0 = arith.constant 0 : i32
    %c0_i32_1 = arith.constant 0 : i32
    return %arg0, %c0_i32, %c0_i32_0 : i32, i32, i32
  }
  func.func @transform_1(%arg0: i32) -> (i32, i32) {
    %c0_i32 = arith.constant 0 : i32
    %c0_i32_0 = arith.constant 0 : i32
    %c0_i32_1 = arith.constant 0 : i32
    return %c0_i32, %c0_i32_0 : i32, i32
  }
  func.func @transform_2(%arg0: i32) -> (i32, i32) {
    %c0_i32 = arith.constant 0 : i32
    %c0_i32_0 = arith.constant 0 : i32
    %c0_i32_1 = arith.constant 0 : i32
    return %c0_i32, %c0_i32_0 : i32, i32
  }
  func.func @transform_3(%arg0: i32) -> (i32, i32, i32) {
    %c0_i32 = arith.constant 0 : i32
    %c0_i32_0 = arith.constant 0 : i32
    %c0_i32_1 = arith.constant 0 : i32
    return %arg0, %c0_i32, %c0_i32_0 : i32, i32, i32
  }
}

</mosaic_0001>

<llo_original>
// kernel: tpu_custom_call.1
$region0: #{tpu_custom_call.1}
  #allocation0 [shape = 'u32[]', space=smem, size = 0x4, offset = 0x4, fixed_abs, tag = 'smem constant byte address 0x4 - core index']
  #allocation1 [shape = 'u32[144,128]{1,0:T(1,128)}', space=vmem, size = 0x12000, scoped, tag = 'internal scratch']
  %s0 = inlined_call_operand.vmem [shape: f32[2,8,128], index: 0, kind: input, shape index: {}]
  %s1 = inlined_call_operand.vmem [shape: f32[128,64], index: 1, kind: input, shape index: {}]
  %s2 = inlined_call_operand.vmem [shape: f32[64,128], index: 2, kind: input, shape index: {}]
  %s3 = inlined_call_operand.hbm [shape: f32[2,8,128], index: 3, kind: output, shape index: {}]
  %s4 = sld [smem:[#allocation0]]
  $region22: #{tpu_custom_call.1} parent=0
    _
  %s6 = ssub.s32 1, %s4
  %s7 = scalar_select 0, %s6, %s4
  $region1: #{tpu_custom_call.1} parent=0
    #allocation2 [shape = 'u8[8192]{0}', space=vmem, size = 0x2000, scoped, tag = 'output window, operand 0, single buffered']
    #allocation3 [shape = 's32[1]{0}', space=sflag, size = 0x4, scoped, tag = 'scoped memory for tpu_custom_call.1']
    %8 = vsyncpa [#allocation3], 0
    // Predicated region
    $region2: #{tpu_custom_call.1} parent=1 // pred_check
      _
    $region3: #{tpu_custom_call.1} parent=1 // pred_check_branch
      %10 = sbr.rel (0) target = $region5
    $region4: #{tpu_custom_call.1} parent=1 // pred_region
      _
    $region5: #{tpu_custom_call.1} parent=1 // pred_fallthru
      _
    // Predicated region
    $region6: #{tpu_custom_call.1} parent=1 // pred_check
      _
    $region7: #{tpu_custom_call.1} parent=1 // pred_check_branch
      %12 = sbr.rel (0) target = $region9
    $region8: #{tpu_custom_call.1} parent=1 // pred_region
      _
    $region9: #{tpu_custom_call.1} parent=1 // pred_fallthru
      _
    // Predicated region
    $region10: #{tpu_custom_call.1} parent=1 // pred_check
      _
    $region11: #{tpu_custom_call.1} parent=1 // pred_check_branch
      %14 = sbr.rel (0) target = $region13
    $region12: #{tpu_custom_call.1} parent=1 // pred_region
      _
    $region13: #{tpu_custom_call.1} parent=1 // pred_fallthru
      _
    %v15 = vld [vmem:[%s0] sm:$0xff]
    %v16 = vld [vmem:[%s0 + $0x8] sm:$0xff]
    %v17 = vld [vmem:[%s1] sm:$0xff]
    %v18 = vld [vmem:[%s1 + $0x8] sm:$0xff]
    %v19 = vld [vmem:[%s1 + $0x10] sm:$0xff]
    %v20 = vld [vmem:[%s1 + $0x18] sm:$0xff]
    %v21 = vld [vmem:[%s1 + $0x20] sm:$0xff]
    %v22 = vld [vmem:[%s1 + $0x28] sm:$0xff]
    %v23 = vld [vmem:[%s1 + $0x30] sm:$0xff]
    %v24 = vld [vmem:[%s1 + $0x38] sm:$0xff]
    %v25 = vld [vmem:[%s1 + $0x40] sm:$0xff]
    %v26 = vld [vmem:[%s1 + $0x48] sm:$0xff]
    %v27 = vld [vmem:[%s1 + $0x50] sm:$0xff]
    %v28 = vld [vmem:[%s1 + $0x58] sm:$0xff]
    %v29 = vld [vmem:[%s1 + $0x60] sm:$0xff]
    %v30 = vld [vmem:[%s1 + $0x68] sm:$0xff]
    %v31 = vld [vmem:[%s1 + $0x70] sm:$0xff]
    %v32 = vld [vmem:[%s1 + $0x78] sm:$0xff]
    %33 = vmatprep.subr.mxu0 0.0
    %34 = vmatpush1.msra.mxu0 %v17
    %35 = vmatprep.subr.mxu0 0.0
    %36 = vmatpush1.msra.mxu0 %v18
    %37 = vmatprep.subr.mxu0 0.0
    %38 = vmatpush1.msra.mxu0 %v19
    %39 = vmatprep.subr.mxu0 0.0
    %40 = vmatpush1.msra.mxu0 %v20
    %41 = vmatprep.subr.mxu0 0.0
    %42 = vmatpush1.msra.mxu0 %v21
    %43 = vmatprep.subr.mxu0 0.0
    %44 = vmatpush1.msra.mxu0 %v22
    %45 = vmatprep.subr.mxu0 0.0
    %46 = vmatpush1.msra.mxu0 %v23
    %47 = vmatprep.subr.mxu0 0.0
    %48 = vmatpush1.msra.mxu0 %v24
    %49 = vmatprep.subr.mxu0 0.0
    %50 = vmatpush1.msra.mxu0 %v25
    %51 = vmatprep.subr.mxu0 0.0
    %52 = vmatpush1.msra.mxu0 %v26
    %53 = vmatprep.subr.mxu0 0.0
    %54 = vmatpush1.msra.mxu0 %v27
    %55 = vmatprep.subr.mxu0 0.0
    %56 = vmatpush1.msra.mxu0 %v28
    %57 = vmatprep.subr.mxu0 0.0
    %58 = vmatpush1.msra.mxu0 %v29
    %59 = vmatprep.subr.mxu0 0.0
    %60 = vmatpush1.msra.mxu0 %v30
    %61 = vmatprep.subr.mxu0 0.0
    %62 = vmatpush1.msra.mxu0 %v31
    %63 = vmatprep.subr.mxu0 0.0
    %64 = vmatpush1.msra.mxu0 %v32
    %65 = vmatprep.subr.mxu0 0.0
    %66 = vmatpush1.msra.mxu0 0.0
    %67 = vmatprep.subr.mxu0 0.0
    %68 = vmatpush1.msra.mxu0 0.0
    %69 = vmatprep.subr.mxu0 0.0
    %70 = vmatpush1.msra.mxu0 0.0
    %71 = vmatprep.subr.mxu0 0.0
    %72 = vmatpush1.msra.mxu0 0.0
    %73 = vmatprep.subr.mxu0 0.0
    %74 = vmatpush1.msra.mxu0 0.0
    %75 = vmatprep.subr.mxu0 0.0
    %76 = vmatpush1.msra.mxu0 0.0
    %77 = vmatprep.subr.mxu0 0.0
    %78 = vmatpush1.msra.mxu0 0.0
    %79 = vmatprep.subr.mxu0 0.0
    %80 = vmatpush1.msra.mxu0 0.0
    %81 = vmatprep.subr.mxu0 0.0
    %82 = vmatpush1.msra.mxu0 0.0
    %83 = vmatprep.subr.mxu0 0.0
    %84 = vmatpush1.msra.mxu0 0.0
    %85 = vmatprep.subr.mxu0 0.0
    %86 = vmatpush1.msra.mxu0 0.0
    %87 = vmatprep.subr.mxu0 0.0
    %88 = vmatpush1.msra.mxu0 0.0
    %89 = vmatprep.subr.mxu0 0.0
    %90 = vmatpush1.msra.mxu0 0.0
    %91 = vmatprep.subr.mxu0 0.0
    %92 = vmatpush1.msra.mxu0 0.0
    %93 = vmatprep.subr.mxu0 0.0
    %94 = vmatpush1.msra.mxu0 0.0
    %95 = vmatprep.subr.mxu0 0.0
    %96 = vmatpush1.msra.mxu0 0.0
    %97 = vmatprep.mubr.f32.mxu0 0.0
    %98 = vmatmul.mubr.f32.gmra.mrb[0].mxu0 %v15
    %v99 = vpop.f32.mrb[0].mxu0
    %v100 = vadd.f32 0.0, %v99
    %v101 = vpop.f32.mrb[0].mxu0
    %102 = vmatprep.mubr.f32.mxu0 0.0
    %103 = vmatmul.mubr.f32.gmra.mrb[0].mxu0 %v16
    %v104 = vpop.f32.mrb[0].mxu0
    %v105 = vadd.f32 0.0, %v104
    %v106 = vpop.f32.mrb[0].mxu0
    %107 = vdwg.mxu0
    %vm108 = vcmask 523264
    %v109 = vsel %vm108, %v100, -inf
    %v110 = vrot.slane %v109, 4
    %v111 = vmax.f32 %v109, %v110
    %v112 = vrot.slane %v111, 2
    %v113 = vmax.f32 %v111, %v112
    %v114 = vrot.slane %v113, 1
    %v115 = vmax.f32 %v113, %v114
    %v116 = vsel %vm108, %v105, -inf
    %v117 = vrot.slane %v116, 4
    %v118 = vmax.f32 %v116, %v117
    %v119 = vrot.slane %v118, 2
    %v120 = vmax.f32 %v118, %v119
    %v121 = vrot.slane %v120, 1
    %v122 = vmax.f32 %v120, %v121
    %v123 = vsub.f32 %v100, %v115
    %v124 = vsub.f32 %v105, %v122
    %v125 = vmul.f32 %v123, 1.442695
    %v126 = vpow.pop %v125
    %v127 = vmul.f32 %v124, 1.442695
    %v128 = vpow.pop %v127
    %v129 = vsel %vm108, %v126, 0.0
    %v130 = vrot.slane %v129, 4
    %v131 = vadd.f32 %v129, %v130
    %v132 = vrot.slane %v131, 2
    %v133 = vadd.f32 %v131, %v132
    %v134 = vrot.slane %v133, 1
    %v135 = vadd.f32 %v133, %v134
    %v136 = vsel %vm108, %v128, 0.0
    %v137 = vrot.slane %v136, 4
    %v138 = vadd.f32 %v136, %v137
    %v139 = vrot.slane %v138, 2
    %v140 = vadd.f32 %v138, %v139
    %v141 = vrot.slane %v140, 1
    %v142 = vadd.f32 %v140, %v141
    %v143 = vrcp.pop %v135
    %v144 = vmul.f32 1.0, %v143
    %v145 = vrcp.pop %v142
    %v146 = vmul.f32 1.0, %v145
    %v147 = vmul.f32 %v126, %v144
    %v148 = vmul.f32 %v128, %v146
    %v149 = vsel %vm108, %v147, 0.0
    %150 = vadd.xlane.f32.xlu0 %v149
    %v151 = vpop.xlane.xlu0 %150
    %v152 = vsel %vm108, %v148, 0.0
    %153 = vadd.xlane.f32.xlu0 %v152
    %v154 = vpop.xlane.xlu0 %153
    %v155 = vld [vmem:[%s2] sm:$0xff]
    %v156 = vld [vmem:[%s2 + $0x8] sm:$0xff]
    %v157 = vld [vmem:[%s2 + $0x10] sm:$0xff]
    %v158 = vld [vmem:[%s2 + $0x18] sm:$0xff]
    %v159 = vld [vmem:[%s2 + $0x20] sm:$0xff]
    %v160 = vld [vmem:[%s2 + $0x28] sm:$0xff]
    %v161 = vld [vmem:[%s2 + $0x30] sm:$0xff]
    %v162 = vld [vmem:[%s2 + $0x38] sm:$0xff]
    %v164 = vsel %vm108, %v147, 0
    %v167 = vsel %vm108, %v148, 0
    %169 = vmatprep.subr.mxu0 0.0
    %170 = vmatpush1.msra.mxu0 %v155
    %171 = vmatprep.subr.mxu0 0.0
    %172 = vmatpush1.msra.mxu0 %v156
    %173 = vmatprep.subr.mxu0 0.0
    %174 = vmatpush1.msra.mxu0 %v157
    %175 = vmatprep.subr.mxu0 0.0
    %176 = vmatpush1.msra.mxu0 %v158
    %177 = vmatprep.subr.mxu0 0.0
    %178 = vmatpush1.msra.mxu0 %v159
    %179 = vmatprep.subr.mxu0 0.0
    %180 = vmatpush1.msra.mxu0 %v160
    %181 = vmatprep.subr.mxu0 0.0
    %182 = vmatpush1.msra.mxu0 %v161
    %183 = vmatprep.subr.mxu0 0.0
    %184 = vmatpush1.msra.mxu0 %v162
    %185 = vmatprep.subr.mxu0 0.0
    %186 = vmatpush1.msra.mxu0 0.0
    %187 = vmatprep.subr.mxu0 0.0
    %188 = vmatpush1.msra.mxu0 0.0
    %189 = vmatprep.subr.mxu0 0.0
    %190 = vmatpush1.msra.mxu0 0.0
    %191 = vmatprep.subr.mxu0 0.0
    %192 = vmatpush1.msra.mxu0 0.0
    %193 = vmatprep.subr.mxu0 0.0
    %194 = vmatpush1.msra.mxu0 0.0
    %195 = vmatprep.subr.mxu0 0.0
    %196 = vmatpush1.msra.mxu0 0.0
    %197 = vmatprep.subr.mxu0 0.0
    %198 = vmatpush1.msra.mxu0 0.0
    %199 = vmatprep.subr.mxu0 0.0
    %200 = vmatpush1.msra.mxu0 0.0
    %201 = vmatprep.subr.mxu0 0.0
    %202 = vmatpush1.msra.mxu0 0.0
    %203 = vmatprep.subr.mxu0 0.0
    %204 = vmatpush1.msra.mxu0 0.0
    %205 = vmatprep.subr.mxu0 0.0
    %206 = vmatpush1.msra.mxu0 0.0
    %207 = vmatprep.subr.mxu0 0.0
    %208 = vmatpush1.msra.mxu0 0.0
    %209 = vmatprep.subr.mxu0 0.0
    %210 = vmatpush1.msra.mxu0 0.0
    %211 = vmatprep.subr.mxu0 0.0
    %212 = vmatpush1.msra.mxu0 0.0
    %213 = vmatprep.subr.mxu0 0.0
    %214 = vmatpush1.msra.mxu0 0.0
    %215 = vmatprep.subr.mxu0 0.0
    %216 = vmatpush1.msra.mxu0 0.0
    %217 = vmatprep.subr.mxu0 0.0
    %218 = vmatpush1.msra.mxu0 0.0
    %219 = vmatprep.subr.mxu0 0.0
    %220 = vmatpush1.msra.mxu0 0.0
    %221 = vmatprep.subr.mxu0 0.0
    %222 = vmatpush1.msra.mxu0 0.0
    %223 = vmatprep.subr.mxu0 0.0
    %224 = vmatpush1.msra.mxu0 0.0
    %225 = vmatprep.subr.mxu0 0.0
    %226 = vmatpush1.msra.mxu0 0.0
    %227 = vmatprep.subr.mxu0 0.0
    %228 = vmatpush1.msra.mxu0 0.0
    %229 = vmatprep.subr.mxu0 0.0
    %230 = vmatpush1.msra.mxu0 0.0
    %231 = vmatprep.subr.mxu0 0.0
    %232 = vmatpush1.msra.mxu0 0.0
    %233 = vmatprep.mubr.f32.mxu0 0.0
    %234 = vmatmul.mubr.f32.gmra.mrb[0].mxu0 %v164
    %v235 = vpop.f32.mrb[0].mxu0
    %v236 = vadd.f32 0.0, %v235
    %v237 = vpop.f32.mrb[0].mxu0
    %238 = vmatprep.mubr.f32.mxu0 0.0
    %239 = vmatmul.mubr.f32.gmra.mrb[0].mxu0 %v167
    %v240 = vpop.f32.mrb[0].mxu0
    %v241 = vadd.f32 0.0, %v240
    %v242 = vpop.f32.mrb[0].mxu0
    %243 = vdwg.mxu0
    %v244 = vrcp.pop %v151
    %v245 = vmul.f32 1.0, %v244
    %v246 = vrcp.pop %v154
    %v247 = vmul.f32 1.0, %v246
    %v248 = vmul.f32 %v236, %v245
    %v249 = vmul.f32 %v241, %v247
    %250 = vst [vmem:[#allocation2] sm:$0xff] %v248
    %251 = vst [vmem:[#allocation2 + $0x8] sm:$0xff] %v249
    // Predicated region
    $region14: #{tpu_custom_call.1} parent=1 // pred_check
      _
    $region15: #{tpu_custom_call.1} parent=1 // pred_check_branch
      %253 = sbr.rel (0) target = $region17
    $region16: #{tpu_custom_call.1} parent=1 // pred_region
      %s255 = ssub.s32 256, 256
      %256 = vsyncadd [#allocation3], %s255
      %s257 = sshll.u32 [#allocation2], 4
      %s258 = int_to_ptr.vmem [resolvable:$true] %s257
      %263 = dma.vmem_to_hbm [thread:$0]  %s258, 256, %s3, [#allocation3], 128, 128, 8
    $region17: #{tpu_custom_call.1} parent=1 // pred_fallthru
      _
    // Predicated region
    $region18: #{tpu_custom_call.1} parent=1 // pred_check
      _
    $region19: #{tpu_custom_call.1} parent=1 // pred_check_branch
      %265 = sbr.rel (0) target = $region21
    $region20: #{tpu_custom_call.1} parent=1 // pred_region
      %266 = dma.done [#allocation3], 256
    $region21: #{tpu_custom_call.1} parent=1 // pred_fallthru
      _
    %267 = vsyncpa [#allocation3], 1

</llo_original>
